<compile_context>
chip_gen: v7x
topology: tpu7x:2x2x1
jax: 0.10.0
libtpu: 0.0.40
codegen_flags: <defaults>
</compile_context>

<pallas_src>
import numpy as np
import jax
import jax.numpy as jnp
from jax import lax
from jax.experimental import pallas as pl
from jax.experimental.pallas import tpu as pltpu

EPS = 1e-5


# --------------------------- kernel construction ----------------------------
def _make_double_conv_kernel(N, H, W, Cin, Cout):
    inv_n = 1.0 / float(N * H * W)

    def conv_bn_relu(pbuf, band_ref, gamma_w, beta_w, p_mat, Ci):
        # pbuf: VMEM ref (N, H+2, W*Ci); rows 0 and H+1 are zero (height halo),
        #       rows 1..H hold the activation in channel-fastest (w*Ci + ci)
        #       layout.  The width halo is folded into band_ref's band pattern.
        # band_ref: (3, W*Ci, W*Cout) banded weights (one band per kh).
        acc = jnp.zeros((N * H, W * Cout), jnp.float32)
        for kh in range(3):
            slab = pbuf[:, kh:kh + H, :].reshape(N * H, W * Ci)
            acc = acc + jnp.dot(slab, band_ref[kh],
                                preferred_element_type=jnp.float32)

        # Single-pass BatchNorm batch statistics (training mode, biased var).
        s = jnp.sum(acc, axis=0, keepdims=True)           # (1, W*Cout)
        ss = jnp.sum(acc * acc, axis=0, keepdims=True)    # (1, W*Cout)
        stats = jnp.concatenate([s, ss], axis=0)          # (2, W*Cout)
        # Fold the W replicas of each channel and broadcast back, in one tiny
        # matmul with the projector P[i, j] = (i % Cout == j % Cout).
        proj = jnp.dot(stats, p_mat,
                       preferred_element_type=jnp.float32) * inv_n
        mean = proj[0:1, :]
        var = proj[1:2, :] - mean * mean
        scale = gamma_w * lax.rsqrt(var + EPS)
        y = (acc - mean) * scale + beta_w
        return jnp.maximum(y, 0.0)                        # (N*H, W*Cout)

    def kernel(x_ref, b1_ref, g1_ref, be1_ref, b2_ref, g2_ref, be2_ref,
               p_ref, o_ref, pbuf1, pbuf2):
        p_mat = p_ref[...]

        # Stage 1: build the height halo in VMEM (no host-side jnp.pad).
        pbuf1[...] = jnp.zeros_like(pbuf1)
        pbuf1[:, 1:H + 1, :] = x_ref[...].astype(jnp.float32)
        y1 = conv_bn_relu(pbuf1, b1_ref, g1_ref[...], be1_ref[...], p_mat, Cin)

        # Stage 2: intermediate activation never leaves VMEM.
        pbuf2[...] = jnp.zeros_like(pbuf2)
        pbuf2[:, 1:H + 1, :] = y1.reshape(N, H, W * Cout)
        y2 = conv_bn_relu(pbuf2, b2_ref, g2_ref[...], be2_ref[...], p_mat, Cout)

        # Lane-dense store: minor dim is W*Cout (a multiple of 128 here).
        o_ref[...] = y2.reshape(N, H, W * Cout).astype(o_ref.dtype)

    return kernel


# --------------------------- host-side param prep ---------------------------
def _banded_weights(w_hwio, W):
    """(3, 3, Ci, Co) HWIO -> (3, W*Ci, W*Co).

    For each kh, build B_kh[(w + kw - 1)*Ci + ci, w*Co + co] = w[kh, kw, ci, co]
    (entries that would read the zero width-halo are simply absent), so the
    3x3/pad=1 conv becomes three dense matmuls over the fused (width, channel)
    axis.
    """
    _, _, Ci, Co = w_hwio.shape
    bands = []
    for kh in range(3):
        b = jnp.zeros((W * Ci, W * Co), w_hwio.dtype)
        for kw in range(3):
            shift = np.eye(W, W, k=1 - kw, dtype=np.float32)  # wp = w + kw - 1
            b = b + jnp.kron(jnp.asarray(shift), w_hwio[kh, kw])
        bands.append(b)
    return jnp.stack(bands, axis=0)


def _channel_projector(W, Cout):
    # P[w*Cout + c, w'*Cout + c'] = 1.0 if c == c' else 0.0
    return jnp.asarray(np.kron(np.ones((W, W), np.float32),
                               np.eye(Cout, dtype=np.float32)))


def _wide(v, W):
    return jnp.tile(v, W).reshape(1, W * v.shape[0])


def double_conv(x_nchw, params):
    """DoubleConv.forward: NCHW in/out; one fused Pallas kernel inside.

    Note: params['b1'] / params['b2'] (conv biases) are intentionally NOT fed
    to the kernel — with batch-statistic BatchNorm they cancel exactly.
    """
    N, Cin, H, W = x_nchw.shape
    Cout = params["w1"].shape[-1]

    x_flat = jnp.transpose(x_nchw, (0, 2, 3, 1)).reshape(N, H, W * Cin)
    b1 = _banded_weights(params["w1"], W)
    b2 = _banded_weights(params["w2"], W)
    g1, be1 = _wide(params["g1"], W), _wide(params["be1"], W)
    g2, be2 = _wide(params["g2"], W), _wide(params["be2"], W)
    proj = _channel_projector(W, Cout)

    kernel = _make_double_conv_kernel(N, H, W, Cin, Cout)
    vmem = pltpu.MemorySpace.VMEM
    out = pl.pallas_call(
        kernel,
        out_shape=jax.ShapeDtypeStruct((N, H, W * Cout), x_nchw.dtype),
        in_specs=[pl.BlockSpec(memory_space=vmem)] * 8,
        out_specs=pl.BlockSpec(memory_space=vmem),
        scratch_shapes=[
            pltpu.VMEM((N, H + 2, W * Cin), jnp.float32),   # padded input
            pltpu.VMEM((N, H + 2, W * Cout), jnp.float32),  # padded intermediate
        ],
        compiler_params=pltpu.CompilerParams(
            vmem_limit_bytes=32 * 1024 * 1024),
    )(x_flat, b1, g1, be1, b2, g2, be2, proj)

    return jnp.transpose(out.reshape(N, H, W, Cout), (0, 3, 1, 2))


# ---------------- pure-JAX reference (for a correctness check) ---------------
def _ref_block(x, w, b, g, be):
    y = lax.conv_general_dilated(
        x, w, window_strides=(1, 1), padding="SAME",
        dimension_numbers=("NHWC", "HWIO", "NHWC"))
    y = y + b
    m = jnp.mean(y, axis=(0, 1, 2), keepdims=True)
    v = jnp.mean((y - m) ** 2, axis=(0, 1, 2), keepdims=True)
    y = (y - m) * lax.rsqrt(v + EPS) * g + be
    return jnp.maximum(y, 0.0)


def _ref_double_conv(x_nchw, p):
    x = jnp.transpose(x_nchw, (0, 2, 3, 1))
    y = _ref_block(x, p["w1"], p["b1"], p["g1"], p["be1"])
    y = _ref_block(y, p["w2"], p["b2"], p["g2"], p["be2"])
    return jnp.transpose(y, (0, 3, 1, 2))


if __name__ == "__main__":
    N, C_IN, C_OUT, H, W = 2, 4, 8, 16, 16

    key = jax.random.PRNGKey(0)
    kx, k1, k2, k3, k4, k5, k6, k7, k8 = jax.random.split(key, 9)

    x = jax.random.normal(kx, (N, C_IN, H, W), jnp.float32)  # NCHW like PyTorch

    params = {
        # conv1: Conv2d(in=C_IN, out=C_OUT, k=3, pad=1), weights stored HWIO
        "w1": jax.random.normal(k1, (3, 3, C_IN, C_OUT), jnp.float32) * 0.2,
        "b1": jax.random.normal(k2, (C_OUT,), jnp.float32) * 0.1,
        "g1": 1.0 + 0.1 * jax.random.normal(k3, (C_OUT,), jnp.float32),
        "be1": 0.1 * jax.random.normal(k4, (C_OUT,), jnp.float32),
        # conv2: Conv2d(in=C_OUT, out=C_OUT, k=3, pad=1)
        "w2": jax.random.normal(k5, (3, 3, C_OUT, C_OUT), jnp.float32) * 0.2,
        "b2": jax.random.normal(k6, (C_OUT,), jnp.float32) * 0.1,
        "g2": 1.0 + 0.1 * jax.random.normal(k7, (C_OUT,), jnp.float32),
        "be2": 0.1 * jax.random.normal(k8, (C_OUT,), jnp.float32),
    }

    out = jax.block_until_ready(jax.jit(double_conv)(x, params))
    assert out.shape == (N, C_OUT, H, W), out.shape

    ref = jax.block_until_ready(_ref_double_conv(x, params))
    max_err = float(jnp.max(jnp.abs(out - ref)))
    assert jnp.allclose(out, ref, atol=1e-4, rtol=1e-3), max_err

    print("KERNEL_OK")
</pallas_src>

<mosaic_0001>
module attributes {stable_mosaic.version = 11 : i64} {
  func.func @kernel(%arg0: memref<2x16x64xf32, #tpu.memory_space<vmem>>, %arg1: memref<3x64x128xf32, #tpu.memory_space<vmem>>, %arg2: memref<1x128xf32, #tpu.memory_space<vmem>>, %arg3: memref<1x128xf32, #tpu.memory_space<vmem>>, %arg4: memref<3x128x128xf32, #tpu.memory_space<vmem>>, %arg5: memref<1x128xf32, #tpu.memory_space<vmem>>, %arg6: memref<1x128xf32, #tpu.memory_space<vmem>>, %arg7: memref<128x128xf32, #tpu.memory_space<vmem>>, %arg8: memref<2x16x128xf32, #tpu.memory_space<vmem>>, %arg9: memref<2x18x64xf32, #tpu.memory_space<vmem>>, %arg10: memref<2x18x128xf32, #tpu.memory_space<vmem>>) attributes {dimension_semantics = [], scalar_prefetch = 0 : i64, scratch_operands = 2 : i64, tpu.core_type = #tpu.core_type<tc>} {
    %c0 = arith.constant 0 : index
    %c0_0 = arith.constant 0 : index
    %0 = vector.load %arg7[%c0, %c0_0] : memref<128x128xf32, #tpu.memory_space<vmem>>, vector<128x128xf32>
    %cst = arith.constant 0.000000e+00 : f32
    %1 = vector.broadcast %cst : f32 to vector<2x18x64xf32>
    %c0_1 = arith.constant 0 : index
    %c0_2 = arith.constant 0 : index
    %c0_3 = arith.constant 0 : index
    %2 = vector.load %arg9[%c0_1, %c0_2, %c0_3] : memref<2x18x64xf32, #tpu.memory_space<vmem>>, vector<2x18x64xf32>
    tpu.vector_store %arg9[%c0_1, %c0_2, %c0_3], %1 {strides = array<i32>} : memref<2x18x64xf32, #tpu.memory_space<vmem>>, vector<2x18x64xf32>,
    %c0_4 = arith.constant 0 : index
    %c0_5 = arith.constant 0 : index
    %c0_6 = arith.constant 0 : index
    %3 = vector.load %arg0[%c0_4, %c0_5, %c0_6] : memref<2x16x64xf32, #tpu.memory_space<vmem>>, vector<2x16x64xf32>
    %c0_7 = arith.constant 0 : index
    %c1 = arith.constant 1 : index
    %c0_8 = arith.constant 0 : index
    %4 = vector.load %arg9[%c0_7, %c1, %c0_8] : memref<2x18x64xf32, #tpu.memory_space<vmem>>, vector<2x16x64xf32>
    tpu.vector_store %arg9[%c0_7, %c1, %c0_8], %3 {strides = array<i32>} : memref<2x18x64xf32, #tpu.memory_space<vmem>>, vector<2x16x64xf32>,
    %c0_9 = arith.constant 0 : index
    %c0_10 = arith.constant 0 : index
    %5 = vector.load %arg2[%c0_9, %c0_10] : memref<1x128xf32, #tpu.memory_space<vmem>>, vector<1x128xf32>
    %c0_11 = arith.constant 0 : index
    %c0_12 = arith.constant 0 : index
    %6 = vector.load %arg3[%c0_11, %c0_12] : memref<1x128xf32, #tpu.memory_space<vmem>>, vector<1x128xf32>
    %cst_13 = arith.constant 0.000000e+00 : f32
    %7 = vector.broadcast %cst_13 : f32 to vector<32x128xf32>
    %c0_14 = arith.constant 0 : index
    %c0_15 = arith.constant 0 : index
    %c0_16 = arith.constant 0 : index
    %8 = vector.load %arg9[%c0_14, %c0_15, %c0_16] : memref<2x18x64xf32, #tpu.memory_space<vmem>>, vector<2x16x64xf32>
    %9 = vector.shape_cast %8 : vector<2x16x64xf32> to vector<32x64xf32>
    %c0_17 = arith.constant 0 : index
    %c0_18 = arith.constant 0 : index
    %c0_19 = arith.constant 0 : index
    %10 = vector.load %arg1[%c0_17, %c0_18, %c0_19] : memref<3x64x128xf32, #tpu.memory_space<vmem>>, vector<1x64x128xf32>
    %11 = vector.shape_cast %10 : vector<1x64x128xf32> to vector<64x128xf32>
    %cst_20 = arith.constant dense<0.000000e+00> : vector<32x128xf32>
    %12 = tpu.matmul %9, %11, %cst_20 {dimension_numbers = #tpu.dot_dimension_numbers<[1], [0], [0], [1], [0, 0, 1, 1], [], []>} : vector<32x64xf32>, vector<64x128xf32>, vector<32x128xf32> -> vector<32x128xf32>
    %13 = arith.addf %7, %12 : vector<32x128xf32>
    %c0_21 = arith.constant 0 : index
    %c1_22 = arith.constant 1 : index
    %c0_23 = arith.constant 0 : index
    %14 = vector.load %arg9[%c0_21, %c1_22, %c0_23] : memref<2x18x64xf32, #tpu.memory_space<vmem>>, vector<2x16x64xf32>
    %15 = vector.shape_cast %14 : vector<2x16x64xf32> to vector<32x64xf32>
    %c1_24 = arith.constant 1 : index
    %c0_25 = arith.constant 0 : index
    %c0_26 = arith.constant 0 : index
    %16 = vector.load %arg1[%c1_24, %c0_25, %c0_26] : memref<3x64x128xf32, #tpu.memory_space<vmem>>, vector<1x64x128xf32>
    %17 = vector.shape_cast %16 : vector<1x64x128xf32> to vector<64x128xf32>
    %cst_27 = arith.constant dense<0.000000e+00> : vector<32x128xf32>
    %18 = tpu.matmul %15, %17, %cst_27 {dimension_numbers = #tpu.dot_dimension_numbers<[1], [0], [0], [1], [0, 0, 1, 1], [], []>} : vector<32x64xf32>, vector<64x128xf32>, vector<32x128xf32> -> vector<32x128xf32>
    %19 = arith.addf %13, %18 : vector<32x128xf32>
    %c0_28 = arith.constant 0 : index
    %c2 = arith.constant 2 : index
    %c0_29 = arith.constant 0 : index
    %20 = vector.load %arg9[%c0_28, %c2, %c0_29] : memref<2x18x64xf32, #tpu.memory_space<vmem>>, vector<2x16x64xf32>
    %21 = vector.shape_cast %20 : vector<2x16x64xf32> to vector<32x64xf32>
    %c2_30 = arith.constant 2 : index
    %c0_31 = arith.constant 0 : index
    %c0_32 = arith.constant 0 : index
    %22 = vector.load %arg1[%c2_30, %c0_31, %c0_32] : memref<3x64x128xf32, #tpu.memory_space<vmem>>, vector<1x64x128xf32>
    %23 = vector.shape_cast %22 : vector<1x64x128xf32> to vector<64x128xf32>
    %cst_33 = arith.constant dense<0.000000e+00> : vector<32x128xf32>
    %24 = tpu.matmul %21, %23, %cst_33 {dimension_numbers = #tpu.dot_dimension_numbers<[1], [0], [0], [1], [0, 0, 1, 1], [], []>} : vector<32x64xf32>, vector<64x128xf32>, vector<32x128xf32> -> vector<32x128xf32>
    %25 = arith.addf %19, %24 : vector<32x128xf32>
    %cst_34 = arith.constant dense<0.000000e+00> : vector<128xf32>
    %26 = vector.multi_reduction <add>, %25, %cst_34 [0] : vector<32x128xf32> to vector<128xf32>
    %27 = vector.shape_cast %26 : vector<128xf32> to vector<1x128xf32>
    %28 = arith.mulf %25, %25 : vector<32x128xf32>
    %cst_35 = arith.constant dense<0.000000e+00> : vector<128xf32>
    %29 = vector.multi_reduction <add>, %28, %cst_35 [0] : vector<32x128xf32> to vector<128xf32>
    %30 = vector.shape_cast %29 : vector<128xf32> to vector<1x128xf32>
    %31 = tpu.concatenate %27, %30 in 0 : vector<1x128xf32>, vector<1x128xf32> -> vector<2x128xf32>
    %cst_36 = arith.constant dense<0.000000e+00> : vector<2x128xf32>
    %32 = tpu.matmul %31, %0, %cst_36 {dimension_numbers = #tpu.dot_dimension_numbers<[1], [0], [0], [1], [0, 0, 1, 1], [], []>} : vector<2x128xf32>, vector<128x128xf32>, vector<2x128xf32> -> vector<2x128xf32>
    %cst_37 = arith.constant 0.001953125 : f32
    %33 = vector.broadcast %cst_37 : f32 to vector<2x128xf32>
    %34 = arith.mulf %32, %33 : vector<2x128xf32>
    %35 = vector.extract_strided_slice %34 {offsets = [0, 0], sizes = [1, 128], strides = [1, 1]} : vector<2x128xf32> to vector<1x128xf32>
    %36 = vector.extract_strided_slice %34 {offsets = [1, 0], sizes = [1, 128], strides = [1, 1]} : vector<2x128xf32> to vector<1x128xf32>
    %37 = arith.mulf %35, %35 : vector<1x128xf32>
    %38 = arith.subf %36, %37 : vector<1x128xf32>
    %cst_38 = arith.constant 9.99999974E-6 : f32
    %39 = vector.broadcast %cst_38 : f32 to vector<1x128xf32>
    %40 = arith.addf %38, %39 : vector<1x128xf32>
    %41 = math.rsqrt %40 : vector<1x128xf32>
    %42 = arith.mulf %5, %41 : vector<1x128xf32>
    %43 = vector.broadcast %35 : vector<1x128xf32> to vector<32x128xf32>
    %44 = arith.subf %25, %43 : vector<32x128xf32>
    %45 = vector.broadcast %42 : vector<1x128xf32> to vector<32x128xf32>
    %46 = arith.mulf %44, %45 : vector<32x128xf32>
    %47 = vector.broadcast %6 : vector<1x128xf32> to vector<32x128xf32>
    %48 = arith.addf %46, %47 : vector<32x128xf32>
    %cst_39 = arith.constant 0.000000e+00 : f32
    %49 = vector.broadcast %cst_39 : f32 to vector<32x128xf32>
    %50 = arith.maximumf %48, %49 : vector<32x128xf32>
    %cst_40 = arith.constant 0.000000e+00 : f32
    %51 = vector.broadcast %cst_40 : f32 to vector<2x18x128xf32>
    %c0_41 = arith.constant 0 : index
    %c0_42 = arith.constant 0 : index
    %c0_43 = arith.constant 0 : index
    %52 = vector.load %arg10[%c0_41, %c0_42, %c0_43] : memref<2x18x128xf32, #tpu.memory_space<vmem>>, vector<2x18x128xf32>
    tpu.vector_store %arg10[%c0_41, %c0_42, %c0_43], %51 {strides = array<i32>} : memref<2x18x128xf32, #tpu.memory_space<vmem>>, vector<2x18x128xf32>,
    %53 = vector.shape_cast %50 : vector<32x128xf32> to vector<2x16x128xf32>
    %c0_44 = arith.constant 0 : index
    %c1_45 = arith.constant 1 : index
    %c0_46 = arith.constant 0 : index
    %54 = vector.load %arg10[%c0_44, %c1_45, %c0_46] : memref<2x18x128xf32, #tpu.memory_space<vmem>>, vector<2x16x128xf32>
    tpu.vector_store %arg10[%c0_44, %c1_45, %c0_46], %53 {strides = array<i32>} : memref<2x18x128xf32, #tpu.memory_space<vmem>>, vector<2x16x128xf32>,
    %c0_47 = arith.constant 0 : index
    %c0_48 = arith.constant 0 : index
    %55 = vector.load %arg5[%c0_47, %c0_48] : memref<1x128xf32, #tpu.memory_space<vmem>>, vector<1x128xf32>
    %c0_49 = arith.constant 0 : index
    %c0_50 = arith.constant 0 : index
    %56 = vector.load %arg6[%c0_49, %c0_50] : memref<1x128xf32, #tpu.memory_space<vmem>>, vector<1x128xf32>
    %cst_51 = arith.constant 0.000000e+00 : f32
    %57 = vector.broadcast %cst_51 : f32 to vector<32x128xf32>
    %c0_52 = arith.constant 0 : index
    %c0_53 = arith.constant 0 : index
    %c0_54 = arith.constant 0 : index
    %58 = vector.load %arg10[%c0_52, %c0_53, %c0_54] : memref<2x18x128xf32, #tpu.memory_space<vmem>>, vector<2x16x128xf32>
    %59 = vector.shape_cast %58 : vector<2x16x128xf32> to vector<32x128xf32>
    %c0_55 = arith.constant 0 : index
    %c0_56 = arith.constant 0 : index
    %c0_57 = arith.constant 0 : index
    %60 = vector.load %arg4[%c0_55, %c0_56, %c0_57] : memref<3x128x128xf32, #tpu.memory_space<vmem>>, vector<1x128x128xf32>
    %61 = vector.shape_cast %60 : vector<1x128x128xf32> to vector<128x128xf32>
    %cst_58 = arith.constant dense<0.000000e+00> : vector<32x128xf32>
    %62 = tpu.matmul %59, %61, %cst_58 {dimension_numbers = #tpu.dot_dimension_numbers<[1], [0], [0], [1], [0, 0, 1, 1], [], []>} : vector<32x128xf32>, vector<128x128xf32>, vector<32x128xf32> -> vector<32x128xf32>
    %63 = arith.addf %57, %62 : vector<32x128xf32>
    %c0_59 = arith.constant 0 : index
    %c1_60 = arith.constant 1 : index
    %c0_61 = arith.constant 0 : index
    %64 = vector.load %arg10[%c0_59, %c1_60, %c0_61] : memref<2x18x128xf32, #tpu.memory_space<vmem>>, vector<2x16x128xf32>
    %65 = vector.shape_cast %64 : vector<2x16x128xf32> to vector<32x128xf32>
    %c1_62 = arith.constant 1 : index
    %c0_63 = arith.constant 0 : index
    %c0_64 = arith.constant 0 : index
    %66 = vector.load %arg4[%c1_62, %c0_63, %c0_64] : memref<3x128x128xf32, #tpu.memory_space<vmem>>, vector<1x128x128xf32>
    %67 = vector.shape_cast %66 : vector<1x128x128xf32> to vector<128x128xf32>
    %cst_65 = arith.constant dense<0.000000e+00> : vector<32x128xf32>
    %68 = tpu.matmul %65, %67, %cst_65 {dimension_numbers = #tpu.dot_dimension_numbers<[1], [0], [0], [1], [0, 0, 1, 1], [], []>} : vector<32x128xf32>, vector<128x128xf32>, vector<32x128xf32> -> vector<32x128xf32>
    %69 = arith.addf %63, %68 : vector<32x128xf32>
    %c0_66 = arith.constant 0 : index
    %c2_67 = arith.constant 2 : index
    %c0_68 = arith.constant 0 : index
    %70 = vector.load %arg10[%c0_66, %c2_67, %c0_68] : memref<2x18x128xf32, #tpu.memory_space<vmem>>, vector<2x16x128xf32>
    %71 = vector.shape_cast %70 : vector<2x16x128xf32> to vector<32x128xf32>
    %c2_69 = arith.constant 2 : index
    %c0_70 = arith.constant 0 : index
    %c0_71 = arith.constant 0 : index
    %72 = vector.load %arg4[%c2_69, %c0_70, %c0_71] : memref<3x128x128xf32, #tpu.memory_space<vmem>>, vector<1x128x128xf32>
    %73 = vector.shape_cast %72 : vector<1x128x128xf32> to vector<128x128xf32>
    %cst_72 = arith.constant dense<0.000000e+00> : vector<32x128xf32>
    %74 = tpu.matmul %71, %73, %cst_72 {dimension_numbers = #tpu.dot_dimension_numbers<[1], [0], [0], [1], [0, 0, 1, 1], [], []>} : vector<32x128xf32>, vector<128x128xf32>, vector<32x128xf32> -> vector<32x128xf32>
    %75 = arith.addf %69, %74 : vector<32x128xf32>
    %cst_73 = arith.constant dense<0.000000e+00> : vector<128xf32>
    %76 = vector.multi_reduction <add>, %75, %cst_73 [0] : vector<32x128xf32> to vector<128xf32>
    %77 = vector.shape_cast %76 : vector<128xf32> to vector<1x128xf32>
    %78 = arith.mulf %75, %75 : vector<32x128xf32>
    %cst_74 = arith.constant dense<0.000000e+00> : vector<128xf32>
    %79 = vector.multi_reduction <add>, %78, %cst_74 [0] : vector<32x128xf32> to vector<128xf32>
    %80 = vector.shape_cast %79 : vector<128xf32> to vector<1x128xf32>
    %81 = tpu.concatenate %77, %80 in 0 : vector<1x128xf32>, vector<1x128xf32> -> vector<2x128xf32>
    %cst_75 = arith.constant dense<0.000000e+00> : vector<2x128xf32>
    %82 = tpu.matmul %81, %0, %cst_75 {dimension_numbers = #tpu.dot_dimension_numbers<[1], [0], [0], [1], [0, 0, 1, 1], [], []>} : vector<2x128xf32>, vector<128x128xf32>, vector<2x128xf32> -> vector<2x128xf32>
    %cst_76 = arith.constant 0.001953125 : f32
    %83 = vector.broadcast %cst_76 : f32 to vector<2x128xf32>
    %84 = arith.mulf %82, %83 : vector<2x128xf32>
    %85 = vector.extract_strided_slice %84 {offsets = [0, 0], sizes = [1, 128], strides = [1, 1]} : vector<2x128xf32> to vector<1x128xf32>
    %86 = vector.extract_strided_slice %84 {offsets = [1, 0], sizes = [1, 128], strides = [1, 1]} : vector<2x128xf32> to vector<1x128xf32>
    %87 = arith.mulf %85, %85 : vector<1x128xf32>
    %88 = arith.subf %86, %87 : vector<1x128xf32>
    %cst_77 = arith.constant 9.99999974E-6 : f32
    %89 = vector.broadcast %cst_77 : f32 to vector<1x128xf32>
    %90 = arith.addf %88, %89 : vector<1x128xf32>
    %91 = math.rsqrt %90 : vector<1x128xf32>
    %92 = arith.mulf %55, %91 : vector<1x128xf32>
    %93 = vector.broadcast %85 : vector<1x128xf32> to vector<32x128xf32>
    %94 = arith.subf %75, %93 : vector<32x128xf32>
    %95 = vector.broadcast %92 : vector<1x128xf32> to vector<32x128xf32>
    %96 = arith.mulf %94, %95 : vector<32x128xf32>
    %97 = vector.broadcast %56 : vector<1x128xf32> to vector<32x128xf32>
    %98 = arith.addf %96, %97 : vector<32x128xf32>
    %cst_78 = arith.constant 0.000000e+00 : f32
    %99 = vector.broadcast %cst_78 : f32 to vector<32x128xf32>
    %100 = arith.maximumf %98, %99 : vector<32x128xf32>
    %101 = vector.shape_cast %100 : vector<32x128xf32> to vector<2x16x128xf32>
    %c0_79 = arith.constant 0 : index
    %c0_80 = arith.constant 0 : index
    %c0_81 = arith.constant 0 : index
    %102 = vector.load %arg8[%c0_79, %c0_80, %c0_81] : memref<2x16x128xf32, #tpu.memory_space<vmem>>, vector<2x16x128xf32>
    tpu.vector_store %arg8[%c0_79, %c0_80, %c0_81], %101 {strides = array<i32>} : memref<2x16x128xf32, #tpu.memory_space<vmem>>, vector<2x16x128xf32>,
    return
  }
}

</mosaic_0001>

<llo_original>
// kernel: tile.23
$region0: #{tile.23}
  #allocation0 [shape = 's32[1]{0}', space=sflag, size = 0x4, scoped, tag = 'scoped memory for tile.23']
  %s0 = inlined_call_operand.vmem [shape: f32[8], index: 0, kind: input, shape index: {}]
  %s1 = inlined_call_operand.vmem [shape: f32[16,8], index: 1, kind: output, shape index: {}]
  // Predicated region
  $region2: #{tile.23} parent=0 // pred_check
    _
  $region3: #{tile.23} parent=0 // pred_check_branch
    %3 = sbr.rel (0) target = $region5
  $region4: #{tile.23} parent=0 // pred_region
    _
  $region5: #{tile.23} parent=0 // pred_fallthru
    _
  %v4 = vld [vmem:[%s0] ss:$0 sm:$0xff]
  %5 = vst [vmem:[%s1] sm:$0xff] %v4
  %s6 = scalar_lea.vmem %s1, 8
  %7 = vst [vmem:[%s6] sm:$0xff] %v4

// kernel: tile.24
$region0: #{tile.24}
  %s0 = inlined_call_operand.vmem [shape: f32[16,8], index: 0, kind: input, shape index: {}]
  %s1 = inlined_call_operand.vmem [shape: f32[1,128], index: 1, kind: output, shape index: {}]
  $region1: #{tile.24} parent=0
    #allocation0 [shape = 'u8[4096]{0}', space=vmem, size = 0x1000, scoped, tag = 'scoped mem for output reshape']
    %v2 = vld [vmem:[%s0] sm:$0x1]
    %vm3 = vcmask 64512
    %4 = vst.msk [vmem:[#allocation0] sm:$0x1] %vm3, %v2
    %s5 = scalar_lea.vmem %s0, 15
    %v6 = vld [vmem:[%s5] sm:$0x1]
    %7 = vrot.lane.b32.xlu0 %v6, 120
    %v8 = vpop.permute.xlu0 %7
    %vm9 = vcmask 1048512
    %10 = vst.msk [vmem:[#allocation0] sm:$0x1] %vm9, %v8
    %s11 = scalar_lea.vmem %s0, 14
    %v12 = vld [vmem:[%s11] sm:$0x1]
    %13 = vrot.lane.b32.xlu0 %v12, 112
    %v14 = vpop.permute.xlu0 %13
    %vm15 = vcmask 982912
    %16 = vst.msk [vmem:[#allocation0] sm:$0x1] %vm15, %v14
    %s17 = scalar_lea.vmem %s0, 13
    %v18 = vld [vmem:[%s17] sm:$0x1]
    %19 = vrot.lane.b32.xlu0 %v18, 104
    %v20 = vpop.permute.xlu0 %19
    %vm21 = vcmask 917312
    %22 = vst.msk [vmem:[#allocation0] sm:$0x1] %vm21, %v20
    %s23 = scalar_lea.vmem %s0, 12
    %v24 = vld [vmem:[%s23] sm:$0x1]
    %25 = vrot.lane.b32.xlu0 %v24, 96
    %v26 = vpop.permute.xlu0 %25
    %vm27 = vcmask 851712
    %28 = vst.msk [vmem:[#allocation0] sm:$0x1] %vm27, %v26
    %s29 = scalar_lea.vmem %s0, 11
    %v30 = vld [vmem:[%s29] sm:$0x1]
    %31 = vrot.lane.b32.xlu0 %v30, 88
    %v32 = vpop.permute.xlu0 %31
    %vm33 = vcmask 786112
    %34 = vst.msk [vmem:[#allocation0] sm:$0x1] %vm33, %v32
    %s35 = scalar_lea.vmem %s0, 10
    %v36 = vld [vmem:[%s35] sm:$0x1]
    %37 = vrot.lane.b32.xlu0 %v36, 80
    %v38 = vpop.permute.xlu0 %37
    %vm39 = vcmask 720512
    %40 = vst.msk [vmem:[#allocation0] sm:$0x1] %vm39, %v38
    %s41 = scalar_lea.vmem %s0, 9
    %v42 = vld [vmem:[%s41] sm:$0x1]
    %43 = vrot.lane.b32.xlu0 %v42, 72
    %v44 = vpop.permute.xlu0 %43
    %vm45 = vcmask 654912
    %46 = vst.msk [vmem:[#allocation0] sm:$0x1] %vm45, %v44
    %s47 = scalar_lea.vmem %s0, 8
    %v48 = vld [vmem:[%s47] sm:$0x1]
    %49 = vrot.lane.b32.xlu0 %v48, 64
    %v50 = vpop.permute.xlu0 %49
    %vm51 = vcmask 589312
    %52 = vst.msk [vmem:[#allocation0] sm:$0x1] %vm51, %v50
    %s53 = scalar_lea.vmem %s0, 7
    %v54 = vld [vmem:[%s53] sm:$0x1]
    %55 = vrot.lane.b32.xlu0 %v54, 56
    %v56 = vpop.permute.xlu0 %55
    %vm57 = vcmask 523712
    %58 = vst.msk [vmem:[#allocation0] sm:$0x1] %vm57, %v56
    %s59 = scalar_lea.vmem %s0, 6
    %v60 = vld [vmem:[%s59] sm:$0x1]
    %61 = vrot.lane.b32.xlu0 %v60, 48
    %v62 = vpop.permute.xlu0 %61
    %vm63 = vcmask 458112
    %64 = vst.msk [vmem:[#allocation0] sm:$0x1] %vm63, %v62
    %s65 = scalar_lea.vmem %s0, 5
    %v66 = vld [vmem:[%s65] sm:$0x1]
    %67 = vrot.lane.b32.xlu0 %v66, 40
    %v68 = vpop.permute.xlu0 %67
    %vm69 = vcmask 392512
    %70 = vst.msk [vmem:[#allocation0] sm:$0x1] %vm69, %v68
    %s71 = scalar_lea.vmem %s0, 4
    %v72 = vld [vmem:[%s71] sm:$0x1]
    %73 = vrot.lane.b32.xlu0 %v72, 32
    %v74 = vpop.permute.xlu0 %73
    %vm75 = vcmask 326912
    %76 = vst.msk [vmem:[#allocation0] sm:$0x1] %vm75, %v74
    %s77 = scalar_lea.vmem %s0, 3
    %v78 = vld [vmem:[%s77] sm:$0x1]
    %79 = vrot.lane.b32.xlu0 %v78, 24
    %v80 = vpop.permute.xlu0 %79
    %vm81 = vcmask 261312
    %82 = vst.msk [vmem:[#allocation0] sm:$0x1] %vm81, %v80
    %s83 = scalar_lea.vmem %s0, 2
    %v84 = vld [vmem:[%s83] sm:$0x1]
    %85 = vrot.lane.b32.xlu0 %v84, 16
    %v86 = vpop.permute.xlu0 %85
    %vm87 = vcmask 195712
    %88 = vst.msk [vmem:[#allocation0] sm:$0x1] %vm87, %v86
    %s89 = scalar_lea.vmem %s0, 1
    %v90 = vld [vmem:[%s89] sm:$0x1]
    %91 = vrot.lane.b32.xlu0 %v90, 8
    %v92 = vpop.permute.xlu0 %91
    %vm93 = vcmask 130112
    %94 = vst.msk [vmem:[#allocation0] sm:$0x1] %vm93, %v92
    %s96 = sshllo.u32 0, 1
    %v98 = vld [vmem:[#allocation0] sm:%s96]
    %s99 = sshllo.u32 0, 1
    %100 = vst [vmem:[%s1] sm:%s99] %v98

// kernel: double_conv.1
$region0: #{double_conv.1}
  #allocation0 [shape = 'u32[]', space=smem, size = 0x4, offset = 0x4, fixed_abs, tag = 'smem constant byte address 0x4 - core index']
  #allocation1 [shape = 'u32[144,128]{1,0:T(1,128)}', space=vmem, size = 0x12000, scoped, tag = 'internal scratch']
  #allocation2 [shape = 'f32[2,18,64]{2,1,0:T(8,128)}', space=vmem, size = 0x6000, scoped, tag = 'scratch operand']
  #allocation3 [shape = 'f32[2,18,128]{2,1,0:T(8,128)}', space=vmem, size = 0x6000, scoped, tag = 'scratch operand']
  %s0 = inlined_call_operand.vmem [shape: f32[2,16,64], index: 0, kind: input, shape index: {}]
  %s1 = inlined_call_operand.vmem [shape: f32[3,64,128], index: 1, kind: input, shape index: {}]
  %s2 = inlined_call_operand.vmem [shape: f32[1,128], index: 2, kind: input, shape index: {}]
  %s3 = inlined_call_operand.vmem [shape: f32[1,128], index: 3, kind: input, shape index: {}]
  %s4 = inlined_call_operand.vmem [shape: f32[3,128,128], index: 4, kind: input, shape index: {}]
  %s5 = inlined_call_operand.vmem [shape: f32[1,128], index: 5, kind: input, shape index: {}]
  %s6 = inlined_call_operand.vmem [shape: f32[1,128], index: 6, kind: input, shape index: {}]
  %s7 = inlined_call_operand.vmem [shape: f32[128,128], index: 7, kind: input, shape index: {}]
  %s8 = inlined_call_operand.vmem [shape: f32[2,16,128], index: 8, kind: output, shape index: {}]
  %s9 = sld [smem:[#allocation0]]
  $region42: #{double_conv.1} parent=0
    _
  %s11 = ssub.s32 1, %s9
  %s12 = scalar_select 0, %s11, %s9
  // Predicated region
  $region2: #{double_conv.1} parent=0 // pred_check
    _
  $region3: #{double_conv.1} parent=0 // pred_check_branch
    %14 = sbr.rel (0) target = $region5
  $region4: #{double_conv.1} parent=0 // pred_region
    _
  $region5: #{double_conv.1} parent=0 // pred_fallthru
    _
  // Predicated region
  $region6: #{double_conv.1} parent=0 // pred_check
    _
  $region7: #{double_conv.1} parent=0 // pred_check_branch
    %16 = sbr.rel (0) target = $region9
  $region8: #{double_conv.1} parent=0 // pred_region
    _
  $region9: #{double_conv.1} parent=0 // pred_fallthru
    _
  // Predicated region
  $region10: #{double_conv.1} parent=0 // pred_check
    _
  $region11: #{double_conv.1} parent=0 // pred_check_branch
    %18 = sbr.rel (0) target = $region13
  $region12: #{double_conv.1} parent=0 // pred_region
    _
  $region13: #{double_conv.1} parent=0 // pred_fallthru
    _
  // Predicated region
  $region14: #{double_conv.1} parent=0 // pred_check
    _
  $region15: #{double_conv.1} parent=0 // pred_check_branch
    %20 = sbr.rel (0) target = $region17
  $region16: #{double_conv.1} parent=0 // pred_region
    _
  $region17: #{double_conv.1} parent=0 // pred_fallthru
    _
  // Predicated region
  $region18: #{double_conv.1} parent=0 // pred_check
    _
  $region19: #{double_conv.1} parent=0 // pred_check_branch
    %22 = sbr.rel (0) target = $region21
  $region20: #{double_conv.1} parent=0 // pred_region
    _
  $region21: #{double_conv.1} parent=0 // pred_fallthru
    _
  // Predicated region
  $region22: #{double_conv.1} parent=0 // pred_check
    _
  $region23: #{double_conv.1} parent=0 // pred_check_branch
    %24 = sbr.rel (0) target = $region25
  $region24: #{double_conv.1} parent=0 // pred_region
    _
  $region25: #{double_conv.1} parent=0 // pred_fallthru
    _
  // Predicated region
  $region26: #{double_conv.1} parent=0 // pred_check
    _
  $region27: #{double_conv.1} parent=0 // pred_check_branch
    %26 = sbr.rel (0) target = $region29
  $region28: #{double_conv.1} parent=0 // pred_region
    _
  $region29: #{double_conv.1} parent=0 // pred_fallthru
    _
  // Predicated region
  $region30: #{double_conv.1} parent=0 // pred_check
    _
  $region31: #{double_conv.1} parent=0 // pred_check_branch
    %28 = sbr.rel (0) target = $region33
  $region32: #{double_conv.1} parent=0 // pred_region
    _
  $region33: #{double_conv.1} parent=0 // pred_fallthru
    _
  %v29 = vld [vmem:[%s7] sm:$0xff]
  %v30 = vld [vmem:[%s7 + $0x8] sm:$0xff]
  %v31 = vld [vmem:[%s7 + $0x10] sm:$0xff]
  %v32 = vld [vmem:[%s7 + $0x18] sm:$0xff]
  %v33 = vld [vmem:[%s7 + $0x20] sm:$0xff]
  %v34 = vld [vmem:[%s7 + $0x28] sm:$0xff]
  %v35 = vld [vmem:[%s7 + $0x30] sm:$0xff]
  %v36 = vld [vmem:[%s7 + $0x38] sm:$0xff]
  %v37 = vld [vmem:[%s7 + $0x40] sm:$0xff]
  %v38 = vld [vmem:[%s7 + $0x48] sm:$0xff]
  %v39 = vld [vmem:[%s7 + $0x50] sm:$0xff]
  %v40 = vld [vmem:[%s7 + $0x58] sm:$0xff]
  %v41 = vld [vmem:[%s7 + $0x60] sm:$0xff]
  %v42 = vld [vmem:[%s7 + $0x68] sm:$0xff]
  %v43 = vld [vmem:[%s7 + $0x70] sm:$0xff]
  %v44 = vld [vmem:[%s7 + $0x78] sm:$0xff]
  %vm45 = vcmask 523264
  %46 = vst.msk [vmem:[#allocation2] sm:$0xff] %vm45, 0.0
  %47 = vst.msk [vmem:[#allocation2 + $0x8] sm:$0xff] %vm45, 0.0
  %vm48 = vcmask 517120
  %49 = vst.msk [vmem:[#allocation2 + $0x10] sm:$0x3] %vm48, 0.0
  %50 = vst.msk [vmem:[#allocation2 + $0x18] sm:$0xff] %vm45, 0.0
  %51 = vst.msk [vmem:[#allocation2 + $0x20] sm:$0xff] %vm45, 0.0
  %52 = vst.msk [vmem:[#allocation2 + $0x28] sm:$0x3] %vm48, 0.0
  %v53 = vld [vmem:[%s0] sm:$0xff]
  %v54 = vld [vmem:[%s0 + $0x8] sm:$0xff]
  %v55 = vld [vmem:[%s0 + $0x10] sm:$0xff]
  %v56 = vld [vmem:[%s0 + $0x18] sm:$0xff]
  %57 = vst.msk [vmem:[#allocation2 + $0x1] sm:$0xff] %vm45, %v53
  %58 = vst.msk [vmem:[#allocation2 + $0x9] sm:$0xff] %vm45, %v54
  %59 = vst.msk [vmem:[#allocation2 + $0x19] sm:$0xff] %vm45, %v55
  %60 = vst.msk [vmem:[#allocation2 + $0x21] sm:$0xff] %vm45, %v56
  %v61 = vld [vmem:[%s2] sm:$0x1]
  %v62 = vld [vmem:[%s3] sm:$0x1]
  %v63 = vld [vmem:[#allocation2] sm:$0xff]
  %v64 = vld [vmem:[#allocation2 + $0x8] sm:$0xff]
  %v65 = vld [vmem:[#allocation2 + $0x18] sm:$0xff]
  %v66 = vld [vmem:[#allocation2 + $0x20] sm:$0xff]
  %v67 = vld [vmem:[%s1] sm:$0xff]
  %v68 = vld [vmem:[%s1 + $0x8] sm:$0xff]
  %v69 = vld [vmem:[%s1 + $0x10] sm:$0xff]
  %v70 = vld [vmem:[%s1 + $0x18] sm:$0xff]
  %v71 = vld [vmem:[%s1 + $0x20] sm:$0xff]
  %v72 = vld [vmem:[%s1 + $0x28] sm:$0xff]
  %v73 = vld [vmem:[%s1 + $0x30] sm:$0xff]
  %v74 = vld [vmem:[%s1 + $0x38] sm:$0xff]
  %v75 = vld [vmem:[#allocation2 + $0x1] sm:$0xff]
  %v76 = vld [vmem:[#allocation2 + $0x9] sm:$0xff]
  %v77 = vld [vmem:[#allocation2 + $0x19] sm:$0xff]
  %v78 = vld [vmem:[#allocation2 + $0x21] sm:$0xff]
  %s79 = scalar_lea.vmem %s1, 64
  %v80 = vld [vmem:[%s79] sm:$0xff]
  %v81 = vld [vmem:[%s79 + $0x8] sm:$0xff]
  %v82 = vld [vmem:[%s79 + $0x10] sm:$0xff]
  %v83 = vld [vmem:[%s79 + $0x18] sm:$0xff]
  %v84 = vld [vmem:[%s79 + $0x20] sm:$0xff]
  %v85 = vld [vmem:[%s79 + $0x28] sm:$0xff]
  %v86 = vld [vmem:[%s79 + $0x30] sm:$0xff]
  %v87 = vld [vmem:[%s79 + $0x38] sm:$0xff]
  %v89 = vsel %vm45, %v75, 0
  %v92 = vsel %vm45, %v76, 0
  %v95 = vsel %vm45, %v77, 0
  %v98 = vsel %vm45, %v78, 0
  %100 = vmatprep.subr.mxu0 0.0
  %101 = vmatpush1.msra.mxu0 %v80
  %102 = vmatprep.subr.mxu0 0.0
  %103 = vmatpush1.msra.mxu0 %v81
  %104 = vmatprep.subr.mxu0 0.0
  %105 = vmatpush1.msra.mxu0 %v82
  %106 = vmatprep.subr.mxu0 0.0
  %107 = vmatpush1.msra.mxu0 %v83
  %108 = vmatprep.subr.mxu0 0.0
  %109 = vmatpush1.msra.mxu0 %v84
  %110 = vmatprep.subr.mxu0 0.0
  %111 = vmatpush1.msra.mxu0 %v85
  %112 = vmatprep.subr.mxu0 0.0
  %113 = vmatpush1.msra.mxu0 %v86
  %114 = vmatprep.subr.mxu0 0.0
  %115 = vmatpush1.msra.mxu0 %v87
  %116 = vmatprep.subr.mxu0 0.0
  %117 = vmatpush1.msra.mxu0 0.0
  %118 = vmatprep.subr.mxu0 0.0
  %119 = vmatpush1.msra.mxu0 0.0
  %120 = vmatprep.subr.mxu0 0.0
  %121 = vmatpush1.msra.mxu0 0.0
  %122 = vmatprep.subr.mxu0 0.0
  %123 = vmatpush1.msra.mxu0 0.0
  %124 = vmatprep.subr.mxu0 0.0
  %125 = vmatpush1.msra.mxu0 0.0
  %126 = vmatprep.subr.mxu0 0.0
  %127 = vmatpush1.msra.mxu0 0.0
  %128 = vmatprep.subr.mxu0 0.0
  %129 = vmatpush1.msra.mxu0 0.0
  %130 = vmatprep.subr.mxu0 0.0
  %131 = vmatpush1.msra.mxu0 0.0
  %132 = vmatprep.subr.mxu0 0.0
  %133 = vmatpush1.msra.mxu0 0.0
  %134 = vmatprep.subr.mxu0 0.0
  %135 = vmatpush1.msra.mxu0 0.0
  %136 = vmatprep.subr.mxu0 0.0
  %137 = vmatpush1.msra.mxu0 0.0
  %138 = vmatprep.subr.mxu0 0.0
  %139 = vmatpush1.msra.mxu0 0.0
  %140 = vmatprep.subr.mxu0 0.0
  %141 = vmatpush1.msra.mxu0 0.0
  %142 = vmatprep.subr.mxu0 0.0
  %143 = vmatpush1.msra.mxu0 0.0
  %144 = vmatprep.subr.mxu0 0.0
  %145 = vmatpush1.msra.mxu0 0.0
  %146 = vmatprep.subr.mxu0 0.0
  %147 = vmatpush1.msra.mxu0 0.0
  %148 = vmatprep.subr.mxu0 0.0
  %149 = vmatpush1.msra.mxu0 0.0
  %150 = vmatprep.subr.mxu0 0.0
  %151 = vmatpush1.msra.mxu0 0.0
  %152 = vmatprep.subr.mxu0 0.0
  %153 = vmatpush1.msra.mxu0 0.0
  %154 = vmatprep.subr.mxu0 0.0
  %155 = vmatpush1.msra.mxu0 0.0
  %156 = vmatprep.subr.mxu0 0.0
  %157 = vmatpush1.msra.mxu0 0.0
  %158 = vmatprep.subr.mxu0 0.0
  %159 = vmatpush1.msra.mxu0 0.0
  %160 = vmatprep.subr.mxu0 0.0
  %161 = vmatpush1.msra.mxu0 0.0
  %162 = vmatprep.subr.mxu0 0.0
  %163 = vmatpush1.msra.mxu0 0.0
  %164 = vmatprep.mubr.f32.mxu0 0.0
  %165 = vmatmul.mubr.f32.gmra.mrb[0].mxu0 %v89
  %v166 = vpop.f32.mrb[0].mxu0
  %v167 = vadd.f32 0.0, %v166
  %v168 = vpop.f32.mrb[0].mxu0
  %169 = vmatprep.mubr.f32.mxu0 0.0
  %170 = vmatmul.mubr.f32.gmra.mrb[0].mxu0 %v92
  %v171 = vpop.f32.mrb[0].mxu0
  %v172 = vadd.f32 0.0, %v171
  %v173 = vpop.f32.mrb[0].mxu0
  %174 = vmatprep.mubr.f32.mxu0 0.0
  %175 = vmatmul.mubr.f32.gmra.mrb[0].mxu0 %v95
  %v176 = vpop.f32.mrb[0].mxu0
  %v177 = vadd.f32 0.0, %v176
  %v178 = vpop.f32.mrb[0].mxu0
  %179 = vmatprep.mubr.f32.mxu0 0.0
  %180 = vmatmul.mubr.f32.gmra.mrb[0].mxu0 %v98
  %v181 = vpop.f32.mrb[0].mxu0
  %v182 = vadd.f32 0.0, %v181
  %v183 = vpop.f32.mrb[0].mxu0
  %184 = vdwg.mxu0
  %v186 = vsel %vm45, %v63, 0
  %v189 = vsel %vm45, %v64, 0
  %v192 = vsel %vm45, %v65, 0
  %v195 = vsel %vm45, %v66, 0
  %197 = vmatprep.subr.mxu0 0.0
  %198 = vmatpush1.msra.mxu0 %v67
  %199 = vmatprep.subr.mxu0 0.0
  %200 = vmatpush1.msra.mxu0 %v68
  %201 = vmatprep.subr.mxu0 0.0
  %202 = vmatpush1.msra.mxu0 %v69
  %203 = vmatprep.subr.mxu0 0.0
  %204 = vmatpush1.msra.mxu0 %v70
  %205 = vmatprep.subr.mxu0 0.0
  %206 = vmatpush1.msra.mxu0 %v71
  %207 = vmatprep.subr.mxu0 0.0
  %208 = vmatpush1.msra.mxu0 %v72
  %209 = vmatprep.subr.mxu0 0.0
  %210 = vmatpush1.msra.mxu0 %v73
  %211 = vmatprep.subr.mxu0 0.0
  %212 = vmatpush1.msra.mxu0 %v74
  %213 = vmatprep.subr.mxu0 0.0
  %214 = vmatpush1.msra.mxu0 0.0
  %215 = vmatprep.subr.mxu0 0.0
  %216 = vmatpush1.msra.mxu0 0.0
  %217 = vmatprep.subr.mxu0 0.0
  %218 = vmatpush1.msra.mxu0 0.0
  %219 = vmatprep.subr.mxu0 0.0
  %220 = vmatpush1.msra.mxu0 0.0
  %221 = vmatprep.subr.mxu0 0.0
  %222 = vmatpush1.msra.mxu0 0.0
  %223 = vmatprep.subr.mxu0 0.0
  %224 = vmatpush1.msra.mxu0 0.0
  %225 = vmatprep.subr.mxu0 0.0
  %226 = vmatpush1.msra.mxu0 0.0
  %227 = vmatprep.subr.mxu0 0.0
  %228 = vmatpush1.msra.mxu0 0.0
  %229 = vmatprep.subr.mxu0 0.0
  %230 = vmatpush1.msra.mxu0 0.0
  %231 = vmatprep.subr.mxu0 0.0
  %232 = vmatpush1.msra.mxu0 0.0
  %233 = vmatprep.subr.mxu0 0.0
  %234 = vmatpush1.msra.mxu0 0.0
  %235 = vmatprep.subr.mxu0 0.0
  %236 = vmatpush1.msra.mxu0 0.0
  %237 = vmatprep.subr.mxu0 0.0
  %238 = vmatpush1.msra.mxu0 0.0
  %239 = vmatprep.subr.mxu0 0.0
  %240 = vmatpush1.msra.mxu0 0.0
  %241 = vmatprep.subr.mxu0 0.0
  %242 = vmatpush1.msra.mxu0 0.0
  %243 = vmatprep.subr.mxu0 0.0
  %244 = vmatpush1.msra.mxu0 0.0
  %245 = vmatprep.subr.mxu0 0.0
  %246 = vmatpush1.msra.mxu0 0.0
  %247 = vmatprep.subr.mxu0 0.0
  %248 = vmatpush1.msra.mxu0 0.0
  %249 = vmatprep.subr.mxu0 0.0
  %250 = vmatpush1.msra.mxu0 0.0
  %251 = vmatprep.subr.mxu0 0.0
  %252 = vmatpush1.msra.mxu0 0.0
  %253 = vmatprep.subr.mxu0 0.0
  %254 = vmatpush1.msra.mxu0 0.0
  %255 = vmatprep.subr.mxu0 0.0
  %256 = vmatpush1.msra.mxu0 0.0
  %257 = vmatprep.subr.mxu0 0.0
  %258 = vmatpush1.msra.mxu0 0.0
  %259 = vmatprep.subr.mxu0 0.0
  %260 = vmatpush1.msra.mxu0 0.0
  %261 = vmatprep.mubr.f32.mxu0 0.0
  %262 = vmatmul.mubr.f32.gmra.mrb[0].mxu0 %v186
  %v263 = vpop.f32.mrb[0].mxu0
  %v264 = vadd.f32 %v167, %v263
  %v265 = vpop.f32.mrb[0].mxu0
  %266 = vmatprep.mubr.f32.mxu0 0.0
  %267 = vmatmul.mubr.f32.gmra.mrb[0].mxu0 %v189
  %v268 = vpop.f32.mrb[0].mxu0
  %v269 = vadd.f32 %v172, %v268
  %v270 = vpop.f32.mrb[0].mxu0
  %271 = vmatprep.mubr.f32.mxu0 0.0
  %272 = vmatmul.mubr.f32.gmra.mrb[0].mxu0 %v192
  %v273 = vpop.f32.mrb[0].mxu0
  %v274 = vadd.f32 %v177, %v273
  %v275 = vpop.f32.mrb[0].mxu0
  %276 = vmatprep.mubr.f32.mxu0 0.0
  %277 = vmatmul.mubr.f32.gmra.mrb[0].mxu0 %v195
  %v278 = vpop.f32.mrb[0].mxu0
  %v279 = vadd.f32 %v182, %v278
  %v280 = vpop.f32.mrb[0].mxu0
  %281 = vdwg.mxu0
  %v282 = vld [vmem:[#allocation2 + $0x2] sm:$0xff]
  %v283 = vld [vmem:[#allocation2 + $0xa] sm:$0xff]
  %v284 = vld [vmem:[#allocation2 + $0x1a] sm:$0xff]
  %v285 = vld [vmem:[#allocation2 + $0x22] sm:$0xff]
  %s286 = scalar_lea.vmem %s1, 128
  %v287 = vld [vmem:[%s286] sm:$0xff]
  %v288 = vld [vmem:[%s286 + $0x8] sm:$0xff]
  %v289 = vld [vmem:[%s286 + $0x10] sm:$0xff]
  %v290 = vld [vmem:[%s286 + $0x18] sm:$0xff]
  %v291 = vld [vmem:[%s286 + $0x20] sm:$0xff]
  %v292 = vld [vmem:[%s286 + $0x28] sm:$0xff]
  %v293 = vld [vmem:[%s286 + $0x30] sm:$0xff]
  %v294 = vld [vmem:[%s286 + $0x38] sm:$0xff]
  %v296 = vsel %vm45, %v282, 0
  %v299 = vsel %vm45, %v283, 0
  %v302 = vsel %vm45, %v284, 0
  %v305 = vsel %vm45, %v285, 0
  %307 = vmatprep.subr.mxu0 0.0
  %308 = vmatpush1.msra.mxu0 %v287
  %309 = vmatprep.subr.mxu0 0.0
  %310 = vmatpush1.msra.mxu0 %v288
  %311 = vmatprep.subr.mxu0 0.0
  %312 = vmatpush1.msra.mxu0 %v289
  %313 = vmatprep.subr.mxu0 0.0
  %314 = vmatpush1.msra.mxu0 %v290
  %315 = vmatprep.subr.mxu0 0.0
  %316 = vmatpush1.msra.mxu0 %v291
  %317 = vmatprep.subr.mxu0 0.0
  %318 = vmatpush1.msra.mxu0 %v292
  %319 = vmatprep.subr.mxu0 0.0
  %320 = vmatpush1.msra.mxu0 %v293
  %321 = vmatprep.subr.mxu0 0.0
  %322 = vmatpush1.msra.mxu0 %v294
  %323 = vmatprep.subr.mxu0 0.0
  %324 = vmatpush1.msra.mxu0 0.0
  %325 = vmatprep.subr.mxu0 0.0
  %326 = vmatpush1.msra.mxu0 0.0
  %327 = vmatprep.subr.mxu0 0.0
  %328 = vmatpush1.msra.mxu0 0.0
  %329 = vmatprep.subr.mxu0 0.0
  %330 = vmatpush1.msra.mxu0 0.0
  %331 = vmatprep.subr.mxu0 0.0
  %332 = vmatpush1.msra.mxu0 0.0
  %333 = vmatprep.subr.mxu0 0.0
  %334 = vmatpush1.msra.mxu0 0.0
  %335 = vmatprep.subr.mxu0 0.0
  %336 = vmatpush1.msra.mxu0 0.0
  %337 = vmatprep.subr.mxu0 0.0
  %338 = vmatpush1.msra.mxu0 0.0
  %339 = vmatprep.subr.mxu0 0.0
  %340 = vmatpush1.msra.mxu0 0.0
  %341 = vmatprep.subr.mxu0 0.0
  %342 = vmatpush1.msra.mxu0 0.0
  %343 = vmatprep.subr.mxu0 0.0
  %344 = vmatpush1.msra.mxu0 0.0
  %345 = vmatprep.subr.mxu0 0.0
  %346 = vmatpush1.msra.mxu0 0.0
  %347 = vmatprep.subr.mxu0 0.0
  %348 = vmatpush1.msra.mxu0 0.0
  %349 = vmatprep.subr.mxu0 0.0
  %350 = vmatpush1.msra.mxu0 0.0
  %351 = vmatprep.subr.mxu0 0.0
  %352 = vmatpush1.msra.mxu0 0.0
  %353 = vmatprep.subr.mxu0 0.0
  %354 = vmatpush1.msra.mxu0 0.0
  %355 = vmatprep.subr.mxu0 0.0
  %356 = vmatpush1.msra.mxu0 0.0
  %357 = vmatprep.subr.mxu0 0.0
  %358 = vmatpush1.msra.mxu0 0.0
  %359 = vmatprep.subr.mxu0 0.0
  %360 = vmatpush1.msra.mxu0 0.0
  %361 = vmatprep.subr.mxu0 0.0
  %362 = vmatpush1.msra.mxu0 0.0
  %363 = vmatprep.subr.mxu0 0.0
  %364 = vmatpush1.msra.mxu0 0.0
  %365 = vmatprep.subr.mxu0 0.0
  %366 = vmatpush1.msra.mxu0 0.0
  %367 = vmatprep.subr.mxu0 0.0
  %368 = vmatpush1.msra.mxu0 0.0
  %369 = vmatprep.subr.mxu0 0.0
  %370 = vmatpush1.msra.mxu0 0.0
  %371 = vmatprep.mubr.f32.mxu0 0.0
  %372 = vmatmul.mubr.f32.gmra.mrb[0].mxu0 %v296
  %v373 = vpop.f32.mrb[0].mxu0
  %v374 = vadd.f32 0.0, %v373
  %v375 = vpop.f32.mrb[0].mxu0
  %376 = vmatprep.mubr.f32.mxu0 0.0
  %377 = vmatmul.mubr.f32.gmra.mrb[0].mxu0 %v299
  %v378 = vpop.f32.mrb[0].mxu0
  %v379 = vadd.f32 0.0, %v378
  %v380 = vpop.f32.mrb[0].mxu0
  %381 = vmatprep.mubr.f32.mxu0 0.0
  %382 = vmatmul.mubr.f32.gmra.mrb[0].mxu0 %v302
  %v383 = vpop.f32.mrb[0].mxu0
  %v384 = vadd.f32 0.0, %v383
  %v385 = vpop.f32.mrb[0].mxu0
  %386 = vmatprep.mubr.f32.mxu0 0.0
  %387 = vmatmul.mubr.f32.gmra.mrb[0].mxu0 %v305
  %v388 = vpop.f32.mrb[0].mxu0
  %v389 = vadd.f32 0.0, %v388
  %v390 = vpop.f32.mrb[0].mxu0
  %391 = vdwg.mxu0
  %v392 = vadd.f32 %v264, %v374
  %v393 = vadd.f32 %v269, %v379
  %v394 = vadd.f32 %v274, %v384
  %v395 = vadd.f32 %v279, %v389
  %v396 = vadd.f32 %v392, %v393
  %v397 = vadd.f32 %v396, %v394
  %v398 = vadd.f32 %v397, %v395
  %v399 = vrot.slane %v398, 4
  %v400 = vadd.f32 %v398, %v399
  %v401 = vrot.slane %v400, 2
  %v402 = vadd.f32 %v400, %v401
  %v403 = vrot.slane %v402, 1
  %v404 = vadd.f32 %v402, %v403
  %v405 = vmul.f32 %v392, %v392
  %v406 = vmul.f32 %v393, %v393
  %v407 = vmul.f32 %v394, %v394
  %v408 = vmul.f32 %v395, %v395
  %v409 = vadd.f32 %v405, %v406
  %v410 = vadd.f32 %v409, %v407
  %v411 = vadd.f32 %v410, %v408
  %v412 = vrot.slane %v411, 4
  %v413 = vadd.f32 %v411, %v412
  %v414 = vrot.slane %v413, 2
  %v415 = vadd.f32 %v413, %v414
  %v416 = vrot.slane %v415, 1
  %v417 = vadd.f32 %v415, %v416
  %vm418 = vcmask 1040384
  %v419 = vsel %vm418, %v404, %v417
  %420 = vmatprep.subr.mxu0 0.0
  %421 = vmatpush1.msra.mxu0 %v29
  %422 = vmatprep.subr.mxu0 0.0
  %423 = vmatpush1.msra.mxu0 %v30
  %424 = vmatprep.subr.mxu0 0.0
  %425 = vmatpush1.msra.mxu0 %v31
  %426 = vmatprep.subr.mxu0 0.0
  %427 = vmatpush1.msra.mxu0 %v32
  %428 = vmatprep.subr.mxu0 0.0
  %429 = vmatpush1.msra.mxu0 %v33
  %430 = vmatprep.subr.mxu0 0.0
  %431 = vmatpush1.msra.mxu0 %v34
  %432 = vmatprep.subr.mxu0 0.0
  %433 = vmatpush1.msra.mxu0 %v35
  %434 = vmatprep.subr.mxu0 0.0
  %435 = vmatpush1.msra.mxu0 %v36
  %436 = vmatprep.subr.mxu0 0.0
  %437 = vmatpush1.msra.mxu0 %v37
  %438 = vmatprep.subr.mxu0 0.0
  %439 = vmatpush1.msra.mxu0 %v38
  %440 = vmatprep.subr.mxu0 0.0
  %441 = vmatpush1.msra.mxu0 %v39
  %442 = vmatprep.subr.mxu0 0.0
  %443 = vmatpush1.msra.mxu0 %v40
  %444 = vmatprep.subr.mxu0 0.0
  %445 = vmatpush1.msra.mxu0 %v41
  %446 = vmatprep.subr.mxu0 0.0
  %447 = vmatpush1.msra.mxu0 %v42
  %448 = vmatprep.subr.mxu0 0.0
  %449 = vmatpush1.msra.mxu0 %v43
  %450 = vmatprep.subr.mxu0 0.0
  %451 = vmatpush1.msra.mxu0 %v44
  %452 = vmatprep.subr.mxu0 0.0
  %453 = vmatpush1.msra.mxu0 0.0
  %454 = vmatprep.subr.mxu0 0.0
  %455 = vmatpush1.msra.mxu0 0.0
  %456 = vmatprep.subr.mxu0 0.0
  %457 = vmatpush1.msra.mxu0 0.0
  %458 = vmatprep.subr.mxu0 0.0
  %459 = vmatpush1.msra.mxu0 0.0
  %460 = vmatprep.subr.mxu0 0.0
  %461 = vmatpush1.msra.mxu0 0.0
  %462 = vmatprep.subr.mxu0 0.0
  %463 = vmatpush1.msra.mxu0 0.0
  %464 = vmatprep.subr.mxu0 0.0
  %465 = vmatpush1.msra.mxu0 0.0
  %466 = vmatprep.subr.mxu0 0.0
  %467 = vmatpush1.msra.mxu0 0.0
  %468 = vmatprep.subr.mxu0 0.0
  %469 = vmatpush1.msra.mxu0 0.0
  %470 = vmatprep.subr.mxu0 0.0
  %471 = vmatpush1.msra.mxu0 0.0
  %472 = vmatprep.subr.mxu0 0.0
  %473 = vmatpush1.msra.mxu0 0.0
  %474 = vmatprep.subr.mxu0 0.0
  %475 = vmatpush1.msra.mxu0 0.0
  %476 = vmatprep.subr.mxu0 0.0
  %477 = vmatpush1.msra.mxu0 0.0
  %478 = vmatprep.subr.mxu0 0.0
  %479 = vmatpush1.msra.mxu0 0.0
  %480 = vmatprep.subr.mxu0 0.0
  %481 = vmatpush1.msra.mxu0 0.0
  %482 = vmatprep.subr.mxu0 0.0
  %483 = vmatpush1.msra.mxu0 0.0
  %484 = vmatprep.mubr.f32.mxu0 0.0
  %485 = vmatmul.mubr.f32.gmra.mrb[0].mxu0 %v419
  %v486 = vpop.f32.mrb[0].mxu0
  %v487 = vadd.f32 0.0, %v486
  %v488 = vpop.f32.mrb[0].mxu0
  %489 = vdwg.mxu0
  %v490 = vmul.f32 %v487, 0.001953125
  %v491 = vmul.f32 %v490, %v490
  %v493 = vrot.slane %v491, 7
  %v495 = vsub.f32 %v490, %v493
  %v496 = vadd.f32 %v495, 1e-05
  %v497 = vrsqrt.pop %v496
  %v500 = vunpack.c.l.s4 1966171168
  %v501 = vunpack.c.0.s8 %v500
  %v502 = vlaneseq
  %v503 = vshrl.u32 %v502, 7
  %v504 = vsub.s32 %v501, %v503
  %v505 = vrot.slane %v497, %v504
  %v506 = vcombine.high %v505, %v505
  %v508 = vunpack.c.l.s4 1966171168
  %v509 = vunpack.c.0.s8 %v508
  %v510 = vlaneseq
  %v511 = vshrl.u32 %v510, 7
  %v512 = vsub.s32 %v509, %v511
  %v513 = vrot.slane %v506, %v512
  %v515 = vmul.f32 %v61, %v513
  %v516 = vlaneseq
  %v517 = vshrl.u32 %v516, 7
  %v518 = vsub.s32 0, %v517
  %v519 = vrot.slane %v490, %v518
  %v520 = vsub.f32 %v392, %v519
  %v521 = vsub.f32 %v393, %v519
  %v522 = vsub.f32 %v394, %v519
  %v523 = vsub.f32 %v395, %v519
  %v525 = vlaneseq
  %v526 = vshrl.u32 %v525, 7
  %v527 = vsub.s32 0, %v526
  %v528 = vrot.slane %v515, %v527
  %v530 = vmul.f32 %v520, %v528
  %v531 = vmul.f32 %v521, %v528
  %v532 = vmul.f32 %v522, %v528
  %v533 = vmul.f32 %v523, %v528
  %v535 = vlaneseq
  %v536 = vshrl.u32 %v535, 7
  %v537 = vsub.s32 0, %v536
  %v538 = vrot.slane %v62, %v537
  %v540 = vadd.f32 %v530, %v538
  %v541 = vadd.f32 %v531, %v538
  %v542 = vadd.f32 %v532, %v538
  %v543 = vadd.f32 %v533, %v538
  %v544 = vmax.f32 %v540, 0.0
  %v545 = vmax.f32 %v541, 0.0
  %v546 = vmax.f32 %v542, 0.0
  %v547 = vmax.f32 %v543, 0.0
  %548 = vst [vmem:[#allocation3] sm:$0xff] 0.0
  %549 = vst [vmem:[#allocation3 + $0x8] sm:$0xff] 0.0
  %550 = vst [vmem:[#allocation3 + $0x10] sm:$0x3] 0.0
  %551 = vst [vmem:[#allocation3 + $0x18] sm:$0xff] 0.0
  %552 = vst [vmem:[#allocation3 + $0x20] sm:$0xff] 0.0
  %553 = vst [vmem:[#allocation3 + $0x28] sm:$0x3] 0.0
  %554 = vst [vmem:[#allocation3 + $0x1] sm:$0xff] %v544
  %555 = vst [vmem:[#allocation3 + $0x9] sm:$0xff] %v545
  %556 = vst [vmem:[#allocation3 + $0x19] sm:$0xff] %v546
  %557 = vst [vmem:[#allocation3 + $0x21] sm:$0xff] %v547
  %v558 = vld [vmem:[%s5] sm:$0x1]
  %v559 = vld [vmem:[%s6] sm:$0x1]
  %v560 = vld [vmem:[#allocation3] sm:$0xff]
  %v561 = vld [vmem:[#allocation3 + $0x8] sm:$0xff]
  %v562 = vld [vmem:[#allocation3 + $0x18] sm:$0xff]
  %v563 = vld [vmem:[#allocation3 + $0x20] sm:$0xff]
  %v564 = vld [vmem:[%s4] sm:$0xff]
  %v565 = vld [vmem:[%s4 + $0x8] sm:$0xff]
  %v566 = vld [vmem:[%s4 + $0x10] sm:$0xff]
  %v567 = vld [vmem:[%s4 + $0x18] sm:$0xff]
  %v568 = vld [vmem:[%s4 + $0x20] sm:$0xff]
  %v569 = vld [vmem:[%s4 + $0x28] sm:$0xff]
  %v570 = vld [vmem:[%s4 + $0x30] sm:$0xff]
  %v571 = vld [vmem:[%s4 + $0x38] sm:$0xff]
  %v572 = vld [vmem:[%s4 + $0x40] sm:$0xff]
  %v573 = vld [vmem:[%s4 + $0x48] sm:$0xff]
  %v574 = vld [vmem:[%s4 + $0x50] sm:$0xff]
  %v575 = vld [vmem:[%s4 + $0x58] sm:$0xff]
  %v576 = vld [vmem:[%s4 + $0x60] sm:$0xff]
  %v577 = vld [vmem:[%s4 + $0x68] sm:$0xff]
  %v578 = vld [vmem:[%s4 + $0x70] sm:$0xff]
  %v579 = vld [vmem:[%s4 + $0x78] sm:$0xff]
  %v580 = vld [vmem:[#allocation3 + $0x1] sm:$0xff]
  %v581 = vld [vmem:[#allocation3 + $0x9] sm:$0xff]
  %v582 = vld [vmem:[#allocation3 + $0x19] sm:$0xff]
  %v583 = vld [vmem:[#allocation3 + $0x21] sm:$0xff]
  %s584 = scalar_lea.vmem %s4, 128
  %v585 = vld [vmem:[%s584] sm:$0xff]
  %v586 = vld [vmem:[%s584 + $0x8] sm:$0xff]
  %v587 = vld [vmem:[%s584 + $0x10] sm:$0xff]
  %v588 = vld [vmem:[%s584 + $0x18] sm:$0xff]
  %v589 = vld [vmem:[%s584 + $0x20] sm:$0xff]
  %v590 = vld [vmem:[%s584 + $0x28] sm:$0xff]
  %v591 = vld [vmem:[%s584 + $0x30] sm:$0xff]
  %v592 = vld [vmem:[%s584 + $0x38] sm:$0xff]
  %v593 = vld [vmem:[%s584 + $0x40] sm:$0xff]
  %v594 = vld [vmem:[%s584 + $0x48] sm:$0xff]
  %v595 = vld [vmem:[%s584 + $0x50] sm:$0xff]
  %v596 = vld [vmem:[%s584 + $0x58] sm:$0xff]
  %v597 = vld [vmem:[%s584 + $0x60] sm:$0xff]
  %v598 = vld [vmem:[%s584 + $0x68] sm:$0xff]
  %v599 = vld [vmem:[%s584 + $0x70] sm:$0xff]
  %v600 = vld [vmem:[%s584 + $0x78] sm:$0xff]
  %601 = vmatprep.subr.mxu0 0.0
  %602 = vmatpush1.msra.mxu0 %v585
  %603 = vmatprep.subr.mxu0 0.0
  %604 = vmatpush1.msra.mxu0 %v586
  %605 = vmatprep.subr.mxu0 0.0
  %606 = vmatpush1.msra.mxu0 %v587
  %607 = vmatprep.subr.mxu0 0.0
  %608 = vmatpush1.msra.mxu0 %v588
  %609 = vmatprep.subr.mxu0 0.0
  %610 = vmatpush1.msra.mxu0 %v589
  %611 = vmatprep.subr.mxu0 0.0
  %612 = vmatpush1.msra.mxu0 %v590
  %613 = vmatprep.subr.mxu0 0.0
  %614 = vmatpush1.msra.mxu0 %v591
  %615 = vmatprep.subr.mxu0 0.0
  %616 = vmatpush1.msra.mxu0 %v592
  %617 = vmatprep.subr.mxu0 0.0
  %618 = vmatpush1.msra.mxu0 %v593
  %619 = vmatprep.subr.mxu0 0.0
  %620 = vmatpush1.msra.mxu0 %v594
  %621 = vmatprep.subr.mxu0 0.0
  %622 = vmatpush1.msra.mxu0 %v595
  %623 = vmatprep.subr.mxu0 0.0
  %624 = vmatpush1.msra.mxu0 %v596
  %625 = vmatprep.subr.mxu0 0.0
  %626 = vmatpush1.msra.mxu0 %v597
  %627 = vmatprep.subr.mxu0 0.0
  %628 = vmatpush1.msra.mxu0 %v598
  %629 = vmatprep.subr.mxu0 0.0
  %630 = vmatpush1.msra.mxu0 %v599
  %631 = vmatprep.subr.mxu0 0.0
  %632 = vmatpush1.msra.mxu0 %v600
  %633 = vmatprep.subr.mxu0 0.0
  %634 = vmatpush1.msra.mxu0 0.0
  %635 = vmatprep.subr.mxu0 0.0
  %636 = vmatpush1.msra.mxu0 0.0
  %637 = vmatprep.subr.mxu0 0.0
  %638 = vmatpush1.msra.mxu0 0.0
  %639 = vmatprep.subr.mxu0 0.0
  %640 = vmatpush1.msra.mxu0 0.0
  %641 = vmatprep.subr.mxu0 0.0
  %642 = vmatpush1.msra.mxu0 0.0
  %643 = vmatprep.subr.mxu0 0.0
  %644 = vmatpush1.msra.mxu0 0.0
  %645 = vmatprep.subr.mxu0 0.0
  %646 = vmatpush1.msra.mxu0 0.0
  %647 = vmatprep.subr.mxu0 0.0
  %648 = vmatpush1.msra.mxu0 0.0
  %649 = vmatprep.subr.mxu0 0.0
  %650 = vmatpush1.msra.mxu0 0.0
  %651 = vmatprep.subr.mxu0 0.0
  %652 = vmatpush1.msra.mxu0 0.0
  %653 = vmatprep.subr.mxu0 0.0
  %654 = vmatpush1.msra.mxu0 0.0
  %655 = vmatprep.subr.mxu0 0.0
  %656 = vmatpush1.msra.mxu0 0.0
  %657 = vmatprep.subr.mxu0 0.0
  %658 = vmatpush1.msra.mxu0 0.0
  %659 = vmatprep.subr.mxu0 0.0
  %660 = vmatpush1.msra.mxu0 0.0
  %661 = vmatprep.subr.mxu0 0.0
  %662 = vmatpush1.msra.mxu0 0.0
  %663 = vmatprep.subr.mxu0 0.0
  %664 = vmatpush1.msra.mxu0 0.0
  %665 = vmatprep.mubr.f32.mxu0 0.0
  %666 = vmatmul.mubr.f32.gmra.mrb[0].mxu0 %v580
  %v667 = vpop.f32.mrb[0].mxu0
  %v668 = vadd.f32 0.0, %v667
  %v669 = vpop.f32.mrb[0].mxu0
  %670 = vmatprep.mubr.f32.mxu0 0.0
  %671 = vmatmul.mubr.f32.gmra.mrb[0].mxu0 %v581
  %v672 = vpop.f32.mrb[0].mxu0
  %v673 = vadd.f32 0.0, %v672
  %v674 = vpop.f32.mrb[0].mxu0
  %675 = vmatprep.mubr.f32.mxu0 0.0
  %676 = vmatmul.mubr.f32.gmra.mrb[0].mxu0 %v582
  %v677 = vpop.f32.mrb[0].mxu0
  %v678 = vadd.f32 0.0, %v677
  %v679 = vpop.f32.mrb[0].mxu0
  %680 = vmatprep.mubr.f32.mxu0 0.0
  %681 = vmatmul.mubr.f32.gmra.mrb[0].mxu0 %v583
  %v682 = vpop.f32.mrb[0].mxu0
  %v683 = vadd.f32 0.0, %v682
  %v684 = vpop.f32.mrb[0].mxu0
  %685 = vdwg.mxu0
  %686 = vmatprep.subr.mxu0 0.0
  %687 = vmatpush1.msra.mxu0 %v564
  %688 = vmatprep.subr.mxu0 0.0
  %689 = vmatpush1.msra.mxu0 %v565
  %690 = vmatprep.subr.mxu0 0.0
  %691 = vmatpush1.msra.mxu0 %v566
  %692 = vmatprep.subr.mxu0 0.0
  %693 = vmatpush1.msra.mxu0 %v567
  %694 = vmatprep.subr.mxu0 0.0
  %695 = vmatpush1.msra.mxu0 %v568
  %696 = vmatprep.subr.mxu0 0.0
  %697 = vmatpush1.msra.mxu0 %v569
  %698 = vmatprep.subr.mxu0 0.0
  %699 = vmatpush1.msra.mxu0 %v570
  %700 = vmatprep.subr.mxu0 0.0
  %701 = vmatpush1.msra.mxu0 %v571
  %702 = vmatprep.subr.mxu0 0.0
  %703 = vmatpush1.msra.mxu0 %v572
  %704 = vmatprep.subr.mxu0 0.0
  %705 = vmatpush1.msra.mxu0 %v573
  %706 = vmatprep.subr.mxu0 0.0
  %707 = vmatpush1.msra.mxu0 %v574
  %708 = vmatprep.subr.mxu0 0.0
  %709 = vmatpush1.msra.mxu0 %v575
  %710 = vmatprep.subr.mxu0 0.0
  %711 = vmatpush1.msra.mxu0 %v576
  %712 = vmatprep.subr.mxu0 0.0
  %713 = vmatpush1.msra.mxu0 %v577
  %714 = vmatprep.subr.mxu0 0.0
  %715 = vmatpush1.msra.mxu0 %v578
  %716 = vmatprep.subr.mxu0 0.0
  %717 = vmatpush1.msra.mxu0 %v579
  %718 = vmatprep.subr.mxu0 0.0
  %719 = vmatpush1.msra.mxu0 0.0
  %720 = vmatprep.subr.mxu0 0.0
  %721 = vmatpush1.msra.mxu0 0.0
  %722 = vmatprep.subr.mxu0 0.0
  %723 = vmatpush1.msra.mxu0 0.0
  %724 = vmatprep.subr.mxu0 0.0
  %725 = vmatpush1.msra.mxu0 0.0
  %726 = vmatprep.subr.mxu0 0.0
  %727 = vmatpush1.msra.mxu0 0.0
  %728 = vmatprep.subr.mxu0 0.0
  %729 = vmatpush1.msra.mxu0 0.0
  %730 = vmatprep.subr.mxu0 0.0
  %731 = vmatpush1.msra.mxu0 0.0
  %732 = vmatprep.subr.mxu0 0.0
  %733 = vmatpush1.msra.mxu0 0.0
  %734 = vmatprep.subr.mxu0 0.0
  %735 = vmatpush1.msra.mxu0 0.0
  %736 = vmatprep.subr.mxu0 0.0
  %737 = vmatpush1.msra.mxu0 0.0
  %738 = vmatprep.subr.mxu0 0.0
  %739 = vmatpush1.msra.mxu0 0.0
  %740 = vmatprep.subr.mxu0 0.0
  %741 = vmatpush1.msra.mxu0 0.0
  %742 = vmatprep.subr.mxu0 0.0
  %743 = vmatpush1.msra.mxu0 0.0
  %744 = vmatprep.subr.mxu0 0.0
  %745 = vmatpush1.msra.mxu0 0.0
  %746 = vmatprep.subr.mxu0 0.0
  %747 = vmatpush1.msra.mxu0 0.0
  %748 = vmatprep.subr.mxu0 0.0
  %749 = vmatpush1.msra.mxu0 0.0
  %750 = vmatprep.mubr.f32.mxu0 0.0
  %751 = vmatmul.mubr.f32.gmra.mrb[0].mxu0 %v560
  %v752 = vpop.f32.mrb[0].mxu0
  %v753 = vadd.f32 %v668, %v752
  %v754 = vpop.f32.mrb[0].mxu0
  %755 = vmatprep.mubr.f32.mxu0 0.0
  %756 = vmatmul.mubr.f32.gmra.mrb[0].mxu0 %v561
  %v757 = vpop.f32.mrb[0].mxu0
  %v758 = vadd.f32 %v673, %v757
  %v759 = vpop.f32.mrb[0].mxu0
  %760 = vmatprep.mubr.f32.mxu0 0.0
  %761 = vmatmul.mubr.f32.gmra.mrb[0].mxu0 %v562
  %v762 = vpop.f32.mrb[0].mxu0
  %v763 = vadd.f32 %v678, %v762
  %v764 = vpop.f32.mrb[0].mxu0
  %765 = vmatprep.mubr.f32.mxu0 0.0
  %766 = vmatmul.mubr.f32.gmra.mrb[0].mxu0 %v563
  %v767 = vpop.f32.mrb[0].mxu0
  %v768 = vadd.f32 %v683, %v767
  %v769 = vpop.f32.mrb[0].mxu0
  %770 = vdwg.mxu0
  %v771 = vld [vmem:[#allocation3 + $0x2] sm:$0xff]
  %v772 = vld [vmem:[#allocation3 + $0xa] sm:$0xff]
  %v773 = vld [vmem:[#allocation3 + $0x1a] sm:$0xff]
  %v774 = vld [vmem:[#allocation3 + $0x22] sm:$0xff]
  %s775 = scalar_lea.vmem %s4, 256
  %v776 = vld [vmem:[%s775] sm:$0xff]
  %v777 = vld [vmem:[%s775 + $0x8] sm:$0xff]
  %v778 = vld [vmem:[%s775 + $0x10] sm:$0xff]
  %v779 = vld [vmem:[%s775 + $0x18] sm:$0xff]
  %v780 = vld [vmem:[%s775 + $0x20] sm:$0xff]
  %v781 = vld [vmem:[%s775 + $0x28] sm:$0xff]
  %v782 = vld [vmem:[%s775 + $0x30] sm:$0xff]
  %v783 = vld [vmem:[%s775 + $0x38] sm:$0xff]
  %v784 = vld [vmem:[%s775 + $0x40] sm:$0xff]
  %v785 = vld [vmem:[%s775 + $0x48] sm:$0xff]
  %v786 = vld [vmem:[%s775 + $0x50] sm:$0xff]
  %v787 = vld [vmem:[%s775 + $0x58] sm:$0xff]
  %v788 = vld [vmem:[%s775 + $0x60] sm:$0xff]
  %v789 = vld [vmem:[%s775 + $0x68] sm:$0xff]
  %v790 = vld [vmem:[%s775 + $0x70] sm:$0xff]
  %v791 = vld [vmem:[%s775 + $0x78] sm:$0xff]
  %792 = vmatprep.subr.mxu0 0.0
  %793 = vmatpush1.msra.mxu0 %v776
  %794 = vmatprep.subr.mxu0 0.0
  %795 = vmatpush1.msra.mxu0 %v777
  %796 = vmatprep.subr.mxu0 0.0
  %797 = vmatpush1.msra.mxu0 %v778
  %798 = vmatprep.subr.mxu0 0.0
  %799 = vmatpush1.msra.mxu0 %v779
  %800 = vmatprep.subr.mxu0 0.0
  %801 = vmatpush1.msra.mxu0 %v780
  %802 = vmatprep.subr.mxu0 0.0
  %803 = vmatpush1.msra.mxu0 %v781
  %804 = vmatprep.subr.mxu0 0.0
  %805 = vmatpush1.msra.mxu0 %v782
  %806 = vmatprep.subr.mxu0 0.0
  %807 = vmatpush1.msra.mxu0 %v783
  %808 = vmatprep.subr.mxu0 0.0
  %809 = vmatpush1.msra.mxu0 %v784
  %810 = vmatprep.subr.mxu0 0.0
  %811 = vmatpush1.msra.mxu0 %v785
  %812 = vmatprep.subr.mxu0 0.0
  %813 = vmatpush1.msra.mxu0 %v786
  %814 = vmatprep.subr.mxu0 0.0
  %815 = vmatpush1.msra.mxu0 %v787
  %816 = vmatprep.subr.mxu0 0.0
  %817 = vmatpush1.msra.mxu0 %v788
  %818 = vmatprep.subr.mxu0 0.0
  %819 = vmatpush1.msra.mxu0 %v789
  %820 = vmatprep.subr.mxu0 0.0
  %821 = vmatpush1.msra.mxu0 %v790
  %822 = vmatprep.subr.mxu0 0.0
  %823 = vmatpush1.msra.mxu0 %v791
  %824 = vmatprep.subr.mxu0 0.0
  %825 = vmatpush1.msra.mxu0 0.0
  %826 = vmatprep.subr.mxu0 0.0
  %827 = vmatpush1.msra.mxu0 0.0
  %828 = vmatprep.subr.mxu0 0.0
  %829 = vmatpush1.msra.mxu0 0.0
  %830 = vmatprep.subr.mxu0 0.0
  %831 = vmatpush1.msra.mxu0 0.0
  %832 = vmatprep.subr.mxu0 0.0
  %833 = vmatpush1.msra.mxu0 0.0
  %834 = vmatprep.subr.mxu0 0.0
  %835 = vmatpush1.msra.mxu0 0.0
  %836 = vmatprep.subr.mxu0 0.0
  %837 = vmatpush1.msra.mxu0 0.0
  %838 = vmatprep.subr.mxu0 0.0
  %839 = vmatpush1.msra.mxu0 0.0
  %840 = vmatprep.subr.mxu0 0.0
  %841 = vmatpush1.msra.mxu0 0.0
  %842 = vmatprep.subr.mxu0 0.0
  %843 = vmatpush1.msra.mxu0 0.0
  %844 = vmatprep.subr.mxu0 0.0
  %845 = vmatpush1.msra.mxu0 0.0
  %846 = vmatprep.subr.mxu0 0.0
  %847 = vmatpush1.msra.mxu0 0.0
  %848 = vmatprep.subr.mxu0 0.0
  %849 = vmatpush1.msra.mxu0 0.0
  %850 = vmatprep.subr.mxu0 0.0
  %851 = vmatpush1.msra.mxu0 0.0
  %852 = vmatprep.subr.mxu0 0.0
  %853 = vmatpush1.msra.mxu0 0.0
  %854 = vmatprep.subr.mxu0 0.0
  %855 = vmatpush1.msra.mxu0 0.0
  %856 = vmatprep.mubr.f32.mxu0 0.0
  %857 = vmatmul.mubr.f32.gmra.mrb[0].mxu0 %v771
  %v858 = vpop.f32.mrb[0].mxu0
  %v859 = vadd.f32 0.0, %v858
  %v860 = vpop.f32.mrb[0].mxu0
  %861 = vmatprep.mubr.f32.mxu0 0.0
  %862 = vmatmul.mubr.f32.gmra.mrb[0].mxu0 %v772
  %v863 = vpop.f32.mrb[0].mxu0
  %v864 = vadd.f32 0.0, %v863
  %v865 = vpop.f32.mrb[0].mxu0
  %866 = vmatprep.mubr.f32.mxu0 0.0
  %867 = vmatmul.mubr.f32.gmra.mrb[0].mxu0 %v773
  %v868 = vpop.f32.mrb[0].mxu0
  %v869 = vadd.f32 0.0, %v868
  %v870 = vpop.f32.mrb[0].mxu0
  %871 = vmatprep.mubr.f32.mxu0 0.0
  %872 = vmatmul.mubr.f32.gmra.mrb[0].mxu0 %v774
  %v873 = vpop.f32.mrb[0].mxu0
  %v874 = vadd.f32 0.0, %v873
  %v875 = vpop.f32.mrb[0].mxu0
  %876 = vdwg.mxu0
  %v877 = vadd.f32 %v753, %v859
  %v878 = vadd.f32 %v758, %v864
  %v879 = vadd.f32 %v763, %v869
  %v880 = vadd.f32 %v768, %v874
  %v881 = vadd.f32 %v877, %v878
  %v882 = vadd.f32 %v881, %v879
  %v883 = vadd.f32 %v882, %v880
  %v884 = vrot.slane %v883, 4
  %v885 = vadd.f32 %v883, %v884
  %v886 = vrot.slane %v885, 2
  %v887 = vadd.f32 %v885, %v886
  %v888 = vrot.slane %v887, 1
  %v889 = vadd.f32 %v887, %v888
  %v890 = vmul.f32 %v877, %v877
  %v891 = vmul.f32 %v878, %v878
  %v892 = vmul.f32 %v879, %v879
  %v893 = vmul.f32 %v880, %v880
  %v894 = vadd.f32 %v890, %v891
  %v895 = vadd.f32 %v894, %v892
  %v896 = vadd.f32 %v895, %v893
  %v897 = vrot.slane %v896, 4
  %v898 = vadd.f32 %v896, %v897
  %v899 = vrot.slane %v898, 2
  %v900 = vadd.f32 %v898, %v899
  %v901 = vrot.slane %v900, 1
  %v902 = vadd.f32 %v900, %v901
  %v903 = vsel %vm418, %v889, %v902
  %904 = vmatprep.subr.mxu0 0.0
  %905 = vmatpush1.msra.mxu0 %v29
  %906 = vmatprep.subr.mxu0 0.0
  %907 = vmatpush1.msra.mxu0 %v30
  %908 = vmatprep.subr.mxu0 0.0
  %909 = vmatpush1.msra.mxu0 %v31
  %910 = vmatprep.subr.mxu0 0.0
  %911 = vmatpush1.msra.mxu0 %v32
  %912 = vmatprep.subr.mxu0 0.0
  %913 = vmatpush1.msra.mxu0 %v33
  %914 = vmatprep.subr.mxu0 0.0
  %915 = vmatpush1.msra.mxu0 %v34
  %916 = vmatprep.subr.mxu0 0.0
  %917 = vmatpush1.msra.mxu0 %v35
  %918 = vmatprep.subr.mxu0 0.0
  %919 = vmatpush1.msra.mxu0 %v36
  %920 = vmatprep.subr.mxu0 0.0
  %921 = vmatpush1.msra.mxu0 %v37
  %922 = vmatprep.subr.mxu0 0.0
  %923 = vmatpush1.msra.mxu0 %v38
  %924 = vmatprep.subr.mxu0 0.0
  %925 = vmatpush1.msra.mxu0 %v39
  %926 = vmatprep.subr.mxu0 0.0
  %927 = vmatpush1.msra.mxu0 %v40
  %928 = vmatprep.subr.mxu0 0.0
  %929 = vmatpush1.msra.mxu0 %v41
  %930 = vmatprep.subr.mxu0 0.0
  %931 = vmatpush1.msra.mxu0 %v42
  %932 = vmatprep.subr.mxu0 0.0
  %933 = vmatpush1.msra.mxu0 %v43
  %934 = vmatprep.subr.mxu0 0.0
  %935 = vmatpush1.msra.mxu0 %v44
  %936 = vmatprep.subr.mxu0 0.0
  %937 = vmatpush1.msra.mxu0 0.0
  %938 = vmatprep.subr.mxu0 0.0
  %939 = vmatpush1.msra.mxu0 0.0
  %940 = vmatprep.subr.mxu0 0.0
  %941 = vmatpush1.msra.mxu0 0.0
  %942 = vmatprep.subr.mxu0 0.0
  %943 = vmatpush1.msra.mxu0 0.0
  %944 = vmatprep.subr.mxu0 0.0
  %945 = vmatpush1.msra.mxu0 0.0
  %946 = vmatprep.subr.mxu0 0.0
  %947 = vmatpush1.msra.mxu0 0.0
  %948 = vmatprep.subr.mxu0 0.0
  %949 = vmatpush1.msra.mxu0 0.0
  %950 = vmatprep.subr.mxu0 0.0
  %951 = vmatpush1.msra.mxu0 0.0
  %952 = vmatprep.subr.mxu0 0.0
  %953 = vmatpush1.msra.mxu0 0.0
  %954 = vmatprep.subr.mxu0 0.0
  %955 = vmatpush1.msra.mxu0 0.0
  %956 = vmatprep.subr.mxu0 0.0
  %957 = vmatpush1.msra.mxu0 0.0
  %958 = vmatprep.subr.mxu0 0.0
  %959 = vmatpush1.msra.mxu0 0.0
  %960 = vmatprep.subr.mxu0 0.0
  %961 = vmatpush1.msra.mxu0 0.0
  %962 = vmatprep.subr.mxu0 0.0
  %963 = vmatpush1.msra.mxu0 0.0
  %964 = vmatprep.subr.mxu0 0.0
  %965 = vmatpush1.msra.mxu0 0.0
  %966 = vmatprep.subr.mxu0 0.0
  %967 = vmatpush1.msra.mxu0 0.0
  %968 = vmatprep.mubr.f32.mxu0 0.0
  %969 = vmatmul.mubr.f32.gmra.mrb[0].mxu0 %v903
  %v970 = vpop.f32.mrb[0].mxu0
  %v971 = vadd.f32 0.0, %v970
  %v972 = vpop.f32.mrb[0].mxu0
  %973 = vdwg.mxu0
  %v974 = vmul.f32 %v971, 0.001953125
  %v975 = vmul.f32 %v974, %v974
  %v977 = vrot.slane %v975, 7
  %v979 = vsub.f32 %v974, %v977
  %v980 = vadd.f32 %v979, 1e-05
  %v981 = vrsqrt.pop %v980
  %v984 = vunpack.c.l.s4 1966171168
  %v985 = vunpack.c.0.s8 %v984
  %v986 = vlaneseq
  %v987 = vshrl.u32 %v986, 7
  %v988 = vsub.s32 %v985, %v987
  %v989 = vrot.slane %v981, %v988
  %v990 = vcombine.high %v989, %v989
  %v992 = vunpack.c.l.s4 1966171168
  %v993 = vunpack.c.0.s8 %v992
  %v994 = vlaneseq
  %v995 = vshrl.u32 %v994, 7
  %v996 = vsub.s32 %v993, %v995
  %v997 = vrot.slane %v990, %v996
  %v999 = vmul.f32 %v558, %v997
  %v1000 = vlaneseq
  %v1001 = vshrl.u32 %v1000, 7
  %v1002 = vsub.s32 0, %v1001
  %v1003 = vrot.slane %v974, %v1002
  %v1004 = vsub.f32 %v877, %v1003
  %v1005 = vsub.f32 %v878, %v1003
  %v1006 = vsub.f32 %v879, %v1003
  %v1007 = vsub.f32 %v880, %v1003
  %v1009 = vlaneseq
  %v1010 = vshrl.u32 %v1009, 7
  %v1011 = vsub.s32 0, %v1010
  %v1012 = vrot.slane %v999, %v1011
  %v1014 = vmul.f32 %v1004, %v1012
  %v1015 = vmul.f32 %v1005, %v1012
  %v1016 = vmul.f32 %v1006, %v1012
  %v1017 = vmul.f32 %v1007, %v1012
  %v1019 = vlaneseq
  %v1020 = vshrl.u32 %v1019, 7
  %v1021 = vsub.s32 0, %v1020
  %v1022 = vrot.slane %v559, %v1021
  %v1024 = vadd.f32 %v1014, %v1022
  %v1025 = vadd.f32 %v1015, %v1022
  %v1026 = vadd.f32 %v1016, %v1022
  %v1027 = vadd.f32 %v1017, %v1022
  %v1028 = vmax.f32 %v1024, 0.0
  %v1029 = vmax.f32 %v1025, 0.0
  %v1030 = vmax.f32 %v1026, 0.0
  %v1031 = vmax.f32 %v1027, 0.0
  %1032 = vst [vmem:[%s8] sm:$0xff] %v1028
  %1033 = vst [vmem:[%s8 + $0x8] sm:$0xff] %v1029
  %1034 = vst [vmem:[%s8 + $0x10] sm:$0xff] %v1030
  %1035 = vst [vmem:[%s8 + $0x18] sm:$0xff] %v1031
  // Predicated region
  $region34: #{double_conv.1} parent=0 // pred_check
    _
  $region35: #{double_conv.1} parent=0 // pred_check_branch
    %1037 = sbr.rel (0) target = $region37
  $region36: #{double_conv.1} parent=0 // pred_region
    _
  $region37: #{double_conv.1} parent=0 // pred_fallthru
    _
  // Predicated region
  $region38: #{double_conv.1} parent=0 // pred_check
    _
  $region39: #{double_conv.1} parent=0 // pred_check_branch
    %1039 = sbr.rel (0) target = $region41
  $region40: #{double_conv.1} parent=0 // pred_region
    _
  $region41: #{double_conv.1} parent=0 // pred_fallthru
    _

</llo_original>
